<compile_context>
chip_gen: v6e
topology: v6e:2x2x1
jax: 0.10.0
libtpu: 0.0.40
codegen_flags: <defaults>
</compile_context>

<pallas_src>
import functools

import jax
import jax.numpy as jnp
from jax import lax
from jax.experimental import pallas as pl
from jax.experimental.pallas import tpu as pltpu


def _dice_stats_kernel(logits_ref, labels_ref, stats_ref, *, apply_softmax):
    # logits_ref: (C, TM), labels_ref: (1, TM), stats_ref: (C, 128) per-batch acc.
    i = pl.program_id(1)

    @pl.when(i == 0)
    def _():
        stats_ref[...] = jnp.zeros_like(stats_ref)

    x = logits_ref[...].astype(jnp.float32)                    # (C, TM)
    if apply_softmax:
        m = jnp.max(x, axis=0, keepdims=True)                  # softmax over classes
        e = jnp.exp(x - m)
        p = e * pl.reciprocal(jnp.sum(e, axis=0, keepdims=True), approx=False)
    else:
        p = x

    labels = labels_ref[...].astype(jnp.int32)                 # (1, TM)
    class_ids = lax.broadcasted_iota(jnp.int32, x.shape, 0)    # (C, TM)
    onehot = class_ids == labels                               # bool (C, TM)

    # Per-class partial reductions over this M-tile.
    inter = jnp.sum(jnp.where(onehot, p, 0.0), axis=1, keepdims=True)   # (C, 1)
    tsum = jnp.sum(jnp.where(onehot, 1.0, 0.0), axis=1, keepdims=True)  # (C, 1) == sum(t*t)
    psum2 = jnp.sum(p * p, axis=1, keepdims=True)                       # (C, 1)

    # Scatter the three stats into distinct lanes of a lane-dense (C, 128) block.
    lane = lax.broadcasted_iota(jnp.int32, stats_ref.shape, 1)          # (C, 128)
    partial = (jnp.where(lane == 0, inter, 0.0)
               + jnp.where(lane == 1, tsum, 0.0)
               + jnp.where(lane == 2, psum2, 0.0))
    stats_ref[...] += partial


def _pick_tile(hw):
    for cand in (2048, 1024, 512, 256, 128):
        if cand <= hw and hw % cand == 0:
            return cand
    return 128


def dice_loss_pallas(logits_nchw, target_n1hw, weight=None, softmax=True):
    N, C, H, W = logits_nchw.shape
    HW = H * W
    assert HW % 128 == 0, "H*W must be a multiple of 128 for this kernel"
    # TODO(synk): arbitrary H*W would need padded columns masked out of the stats.

    # Free reshapes only (no transpose, no dtype up-cast on the host).
    logits = logits_nchw.reshape(N, C, HW)
    labels = target_n1hw.reshape(N, 1, HW)

    TM = _pick_tile(HW)
    grid = (N, HW // TM)

    kernel = functools.partial(_dice_stats_kernel, apply_softmax=softmax)

    stats = pl.pallas_call(
        kernel,
        out_shape=jax.ShapeDtypeStruct((N, C, 128), jnp.float32),
        grid_spec=pltpu.PrefetchScalarGridSpec(
            num_scalar_prefetch=0,
            grid=grid,
            in_specs=[
                pl.BlockSpec((pl.Squeezed(), C, TM), lambda n, i: (n, 0, i)),
                pl.BlockSpec((pl.Squeezed(), 1, TM), lambda n, i: (n, 0, i)),
            ],
            out_specs=pl.BlockSpec((pl.Squeezed(), C, 128), lambda n, i: (n, 0, 0)),
        ),
        compiler_params=pltpu.CompilerParams(
            dimension_semantics=("parallel", "arbitrary"),
            vmem_limit_bytes=32 * 1024 * 1024,
        ),
    )(logits, labels)

    # Sum the per-batch partials (tiny) and slice out the three stats lanes.
    stats = jnp.sum(stats, axis=0)            # (C, 128)
    intersect = stats[:, 0]
    sum_t2 = stats[:, 1]                      # == sum(t*t) since t is one-hot
    sum_p2 = stats[:, 2]

    smooth = 1e-05
    dice = (2.0 * intersect + smooth) / (sum_t2 + sum_p2 + smooth)
    per_class_loss = 1.0 - dice               # (C,)

    if weight is None:
        weight_arr = jnp.ones((C,), jnp.float32)
    else:
        weight_arr = jnp.asarray(weight, jnp.float32)

    loss = jnp.sum(per_class_loss * weight_arr) / C
    return loss


def _reference(logits_nchw, target_n1hw, softmax=True):
    # Pure-JAX reference mirroring the PyTorch module.
    N, C, H, W = logits_nchw.shape
    x = logits_nchw.astype(jnp.float32)
    p = jax.nn.softmax(x, axis=1) if softmax else x
    t = jax.nn.one_hot(target_n1hw.reshape(N, H, W).astype(jnp.int32), C, axis=1)
    smooth = 1e-05
    loss = 0.0
    for i in range(C):
        pi = p[:, i]
        ti = t[:, i]
        inter = jnp.sum(pi * ti)
        dice = (2 * inter + smooth) / (jnp.sum(ti * ti) + jnp.sum(pi * pi) + smooth)
        loss = loss + (1.0 - dice)
    return loss / C


if __name__ == "__main__":
    key = jax.random.PRNGKey(0)
    k1, k2 = jax.random.split(key)

    N, C, H, W = 2, 4, 16, 16
    logits = jax.random.normal(k1, (N, C, H, W), dtype=jnp.float32)
    target = jax.random.randint(k2, (N, 1, H, W), minval=0, maxval=C, dtype=jnp.int32)

    loss = dice_loss_pallas(logits, target, weight=None, softmax=True)
    loss = jax.block_until_ready(loss)

    ref = jax.block_until_ready(_reference(logits, target, softmax=True))
    assert jnp.allclose(loss, ref, atol=1e-5, rtol=1e-5), (loss, ref)

    print("KERNEL_OK")
</pallas_src>

<mosaic_0001>
module attributes {stable_mosaic.version = 11 : i64} {
  func.func @_dice_stats_kernel(%arg0: i32, %arg1: i32, %arg2: memref<1x4x256xf32, #tpu.memory_space<vmem>>, %arg3: memref<1x1x256xi32, #tpu.memory_space<vmem>>, %arg4: memref<1x4x128xf32, #tpu.memory_space<vmem>>) attributes {dimension_semantics = [#tpu.dimension_semantics<parallel>, #tpu.dimension_semantics<arbitrary>], iteration_bounds = array<i64: 2, 1>, scalar_prefetch = 0 : i64, scratch_operands = 0 : i64, tpu.core_type = #tpu.core_type<tc>, window_params = [{transform_indices = @transform_0, window_bounds = array<i64: 1, 4, 256>}, {transform_indices = @transform_1, window_bounds = array<i64: 1, 1, 256>}, {transform_indices = @transform_2, window_bounds = array<i64: 1, 4, 128>}]} {
    %c0_i32 = arith.constant 0 : i32
    %0 = arith.cmpi eq, %arg1, %c0_i32 : i32
    %1 = arith.extui %0 : i1 to i32
    %c0_i32_0 = arith.constant 0 : i32
    %2 = arith.cmpi ne, %1, %c0_i32_0 : i32
    scf.if %2 {
      %cst_23 = arith.constant 0.000000e+00 : f32
      %59 = vector.broadcast %cst_23 : f32 to vector<4x128xf32>
      %c0_24 = arith.constant 0 : index
      %c0_25 = arith.constant 0 : index
      %c0_26 = arith.constant 0 : index
      %60 = vector.load %arg4[%c0_24, %c0_25, %c0_26] : memref<1x4x128xf32, #tpu.memory_space<vmem>>, vector<1x4x128xf32>
      %61 = vector.shape_cast %60 : vector<1x4x128xf32> to vector<4x128xf32>
      %62 = vector.shape_cast %59 : vector<4x128xf32> to vector<1x4x128xf32>
      tpu.vector_store %arg4[%c0_24, %c0_25, %c0_26], %62 {strides = array<i32>} : memref<1x4x128xf32, #tpu.memory_space<vmem>>, vector<1x4x128xf32>,
    } else {
    }
    %c0 = arith.constant 0 : index
    %c0_1 = arith.constant 0 : index
    %c0_2 = arith.constant 0 : index
    %3 = vector.load %arg2[%c0, %c0_1, %c0_2] : memref<1x4x256xf32, #tpu.memory_space<vmem>>, vector<1x4x256xf32>
    %4 = vector.shape_cast %3 : vector<1x4x256xf32> to vector<4x256xf32>
    %cst = arith.constant dense<0xFF800000> : vector<256xf32>
    %5 = vector.multi_reduction <maximumf>, %4, %cst [0] : vector<4x256xf32> to vector<256xf32>
    %6 = vector.shape_cast %5 : vector<256xf32> to vector<1x256xf32>
    %7 = vector.broadcast %6 : vector<1x256xf32> to vector<4x256xf32>
    %8 = arith.subf %4, %7 : vector<4x256xf32>
    %9 = math.exp %8 : vector<4x256xf32>
    %cst_3 = arith.constant dense<0.000000e+00> : vector<256xf32>
    %10 = vector.multi_reduction <add>, %9, %cst_3 [0] : vector<4x256xf32> to vector<256xf32>
    %11 = vector.shape_cast %10 : vector<256xf32> to vector<1x256xf32>
    %12 = tpu.reciprocal %11 : vector<1x256xf32> -> vector<1x256xf32>
    %13 = vector.broadcast %12 : vector<1x256xf32> to vector<4x256xf32>
    %14 = arith.mulf %9, %13 : vector<4x256xf32>
    %c0_4 = arith.constant 0 : index
    %c0_5 = arith.constant 0 : index
    %c0_6 = arith.constant 0 : index
    %15 = vector.load %arg3[%c0_4, %c0_5, %c0_6] : memref<1x1x256xi32, #tpu.memory_space<vmem>>, vector<1x1x256xi32>
    %16 = vector.shape_cast %15 : vector<1x1x256xi32> to vector<1x256xi32>
    %17 = tpu.iota {dimensions = array<i32: 0>} : vector<4x256xi32>
    %18 = vector.broadcast %16 : vector<1x256xi32> to vector<4x256xi32>
    %19 = arith.cmpi eq, %17, %18 : vector<4x256xi32>
    %cst_7 = arith.constant 0.000000e+00 : f32
    %20 = vector.broadcast %cst_7 : f32 to vector<4x256xf32>
    %21 = arith.select %19, %14, %20 : vector<4x256xi1>, vector<4x256xf32>
    %cst_8 = arith.constant dense<0.000000e+00> : vector<4xf32>
    %22 = vector.multi_reduction <add>, %21, %cst_8 [1] : vector<4x256xf32> to vector<4xf32>
    %23 = vector.shape_cast %22 : vector<4xf32> to vector<4x1xf32>
    %cst_9 = arith.constant 1.000000e+00 : f32
    %cst_10 = arith.constant 0.000000e+00 : f32
    %24 = vector.broadcast %cst_9 : f32 to vector<4x256xf32>
    %25 = vector.broadcast %cst_10 : f32 to vector<4x256xf32>
    %26 = arith.select %19, %24, %25 : vector<4x256xi1>, vector<4x256xf32>
    %cst_11 = arith.constant dense<0.000000e+00> : vector<4xf32>
    %27 = vector.multi_reduction <add>, %26, %cst_11 [1] : vector<4x256xf32> to vector<4xf32>
    %28 = vector.shape_cast %27 : vector<4xf32> to vector<4x1xf32>
    %29 = arith.mulf %14, %14 : vector<4x256xf32>
    %cst_12 = arith.constant dense<0.000000e+00> : vector<4xf32>
    %30 = vector.multi_reduction <add>, %29, %cst_12 [1] : vector<4x256xf32> to vector<4xf32>
    %31 = vector.shape_cast %30 : vector<4xf32> to vector<4x1xf32>
    %32 = tpu.iota {dimensions = array<i32: 1>} : vector<4x128xi32>
    %c0_i32_13 = arith.constant 0 : i32
    %33 = vector.broadcast %c0_i32_13 : i32 to vector<4x128xi32>
    %34 = arith.cmpi eq, %32, %33 : vector<4x128xi32>
    %cst_14 = arith.constant 0.000000e+00 : f32
    %35 = vector.shape_cast %23 : vector<4x1xf32> to vector<4x1xf32>
    %36 = vector.broadcast %35 : vector<4x1xf32> to vector<4x128xf32>
    %37 = vector.broadcast %cst_14 : f32 to vector<4x128xf32>
    %38 = arith.select %34, %36, %37 : vector<4x128xi1>, vector<4x128xf32>
    %c1_i32 = arith.constant 1 : i32
    %39 = vector.broadcast %c1_i32 : i32 to vector<4x128xi32>
    %40 = arith.cmpi eq, %32, %39 : vector<4x128xi32>
    %cst_15 = arith.constant 0.000000e+00 : f32
    %41 = vector.shape_cast %28 : vector<4x1xf32> to vector<4x1xf32>
    %42 = vector.broadcast %41 : vector<4x1xf32> to vector<4x128xf32>
    %43 = vector.broadcast %cst_15 : f32 to vector<4x128xf32>
    %44 = arith.select %40, %42, %43 : vector<4x128xi1>, vector<4x128xf32>
    %45 = arith.addf %38, %44 : vector<4x128xf32>
    %c2_i32 = arith.constant 2 : i32
    %46 = vector.broadcast %c2_i32 : i32 to vector<4x128xi32>
    %47 = arith.cmpi eq, %32, %46 : vector<4x128xi32>
    %cst_16 = arith.constant 0.000000e+00 : f32
    %48 = vector.shape_cast %31 : vector<4x1xf32> to vector<4x1xf32>
    %49 = vector.broadcast %48 : vector<4x1xf32> to vector<4x128xf32>
    %50 = vector.broadcast %cst_16 : f32 to vector<4x128xf32>
    %51 = arith.select %47, %49, %50 : vector<4x128xi1>, vector<4x128xf32>
    %52 = arith.addf %45, %51 : vector<4x128xf32>
    %c0_17 = arith.constant 0 : index
    %c0_18 = arith.constant 0 : index
    %c0_19 = arith.constant 0 : index
    %53 = vector.load %arg4[%c0_17, %c0_18, %c0_19] : memref<1x4x128xf32, #tpu.memory_space<vmem>>, vector<1x4x128xf32>
    %54 = vector.shape_cast %53 : vector<1x4x128xf32> to vector<4x128xf32>
    %55 = arith.addf %54, %52 : vector<4x128xf32>
    %c0_20 = arith.constant 0 : index
    %c0_21 = arith.constant 0 : index
    %c0_22 = arith.constant 0 : index
    %56 = vector.load %arg4[%c0_20, %c0_21, %c0_22] : memref<1x4x128xf32, #tpu.memory_space<vmem>>, vector<1x4x128xf32>
    %57 = vector.shape_cast %56 : vector<1x4x128xf32> to vector<4x128xf32>
    %58 = vector.shape_cast %55 : vector<4x128xf32> to vector<1x4x128xf32>
    tpu.vector_store %arg4[%c0_20, %c0_21, %c0_22], %58 {strides = array<i32>} : memref<1x4x128xf32, #tpu.memory_space<vmem>>, vector<1x4x128xf32>,
    return
  }
  func.func @transform_0(%arg0: i32, %arg1: i32) -> (i32, i32, i32) {
    %c0_i32 = arith.constant 0 : i32
    %c0_i32_0 = arith.constant 0 : i32
    return %arg0, %c0_i32, %arg1 : i32, i32, i32
  }
  func.func @transform_1(%arg0: i32, %arg1: i32) -> (i32, i32, i32) {
    %c0_i32 = arith.constant 0 : i32
    %c0_i32_0 = arith.constant 0 : i32
    return %arg0, %c0_i32, %arg1 : i32, i32, i32
  }
  func.func @transform_2(%arg0: i32, %arg1: i32) -> (i32, i32, i32) {
    %c0_i32 = arith.constant 0 : i32
    %c0_i32_0 = arith.constant 0 : i32
    %c0_i32_1 = arith.constant 0 : i32
    return %arg0, %c0_i32, %c0_i32_0 : i32, i32, i32
  }
}

</mosaic_0001>

<llo_original>
// kernel: tpu_custom_call.1
$region0: #{tpu_custom_call.1}
  #allocation0 [shape = 'u32[]', space=smem, size = 0x4, offset = 0x4, fixed_abs, tag = 'smem constant byte address 0x4 - core index']
  #allocation1 [shape = 'u32[144,128]{1,0:T(1,128)}', space=vmem, size = 0x12000, scoped, tag = 'internal scratch']
  %s0 = inlined_call_operand.hbm [shape: f32[2,4,256], index: 0, kind: input, shape index: {}]
  %s1 = inlined_call_operand.hbm [shape: s32[2,1,256], index: 1, kind: input, shape index: {}]
  %s2 = inlined_call_operand.hbm [shape: f32[2,4,128], index: 2, kind: output, shape index: {}]
  %s3 = sld [smem:[#allocation0]]
  $region53: #{tpu_custom_call.1} parent=0
    _
  %s5 = ssub.s32 1, %s3
  %s6 = scalar_select 0, %s5, %s3
  $region1: #{tpu_custom_call.1} parent=0
    #allocation2 [shape = 'u8[8192]{0}', space=vmem, size = 0x2000, scoped, tag = 'input window, operand 0']
    #allocation3 [shape = 's32[2]{0}', space=sflag, size = 0x8, scoped, tag = 'scoped memory for tpu_custom_call.1']
    #allocation4 [shape = 's32[2]{0}', space=sflag, size = 0x8, scoped, tag = 'scoped memory for tpu_custom_call.1']
    #allocation5 [shape = 'u8[2048]{0}', space=vmem, size = 0x800, scoped, tag = 'input window, operand 1']
    #allocation6 [shape = 's32[2]{0}', space=sflag, size = 0x8, scoped, tag = 'scoped memory for tpu_custom_call.1']
    #allocation7 [shape = 'u8[4096]{0}', space=vmem, size = 0x1000, scoped, tag = 'output window, operand 0']
    %7 = vsyncpa [#allocation3], 0
    %s8 = scalar_lea.sflag [#allocation3], 1
    %9 = vsyncpa %s8, 0
    %10 = vsyncpa [#allocation6], 0
    %s11 = scalar_lea.sflag [#allocation6], 1
    %12 = vsyncpa %s11, 0
    %13 = vsyncpa [#allocation4], 0
    %s14 = scalar_lea.sflag [#allocation4], 1
    %15 = vsyncpa %s14, 0
    loop: start=0, step=1, limit=4
    $region2: #{tpu_custom_call.1} parent=1 // loop_pre_header
      _
    $region3: #{tpu_custom_call.1} parent=1 // loop_header
      %s17 = sphi 0, %s21
      %p18 = scmp.ge.s32.totalorder %s17, 4
      %s24 = sphi 0, %s36
      %s25 = sphi 0, %s32
      %s26 = sphi 0, %s24
      %s27 = sphi 0, %s25
      %s28 = sphi 0, %s26
      %s29 = sphi 0, %s27
      %s41 = sphi 0, %s43
      %s44 = sphi 0, %s41
      %s45 = sphi 0, %s44
      %s61 = sphi 0, %s45
      %s69 = sphi 0, %s71
      %s72 = sphi 0, %s69
      %s73 = sphi 0, %s72
      %s89 = sphi 0, %s73
      %s95 = sphi 0, %s97
      %s98 = sphi 0, %s95
      %s99 = sphi 0, %s98
      %s115 = sphi 0, %s99
    $region4: #{tpu_custom_call.1} parent=1 // loop_header_branch
      %20 = sbr.rel (%p18) target = $region8
    $region5: #{tpu_custom_call.1} parent=1 // loop_body
      %s22 = ssub.s32 %s17, 1
      %s23 = ssub.s32 %s17, 2
      %s30 = sadd.s32 1, %s25
      %p31 = scmp.ge.s32.totalorder %s30, 1
      %s32 = scalar_select %p31, 0, %s30
      %s33 = sadd.s32 1, %s24
      %s34 = scalar_select %p31, %s33, %s24
      %p35 = scmp.ge.s32.totalorder %s34, 2
      %s36 = scalar_select %p35, 0, %s34
      %s37 = ssub.s32 %s24, %s36
      %s38 = ssub.s32 %s25, %s32
      %s39 = sor.u32 %s37, %s38
      %p40 = scmp.eq.s32.totalorder %s39, 0
      %s42 = sadd.s32 %s41, 1
      %s43 = scalar_select %p40, %s41, %s42
      %p46 = pneg %p40
      %p47 = scmp.eq.s32.totalorder %s17, 1
      %p48 = por %p46, %p47
      %p49 = scmp.ne.s32.totalorder %s41, %s44
      %p50 = scmp.eq.s32.totalorder %s17, 0
      %p51 = por %p49, %p50
      %p52 = scmp.ne.s32.totalorder %s41, %s44
      %p53 = scmp.eq.s32.totalorder %s22, 1
      %p54 = por %p52, %p53
      %p55 = scmp.ne.s32.totalorder %s44, %s45
      %p56 = scmp.eq.s32.totalorder %s22, 0
      %p57 = por %p55, %p56
      %p58 = scmp.ne.s32.totalorder %s44, %s45
      %p59 = scmp.eq.s32.totalorder %s23, 1
      %p60 = por %p58, %p59
      %p62 = scmp.ne.s32.totalorder %s45, %s61
      %p63 = scmp.eq.s32.totalorder %s23, 0
      %p64 = por %p62, %p63
      %s65 = ssub.s32 %s24, %s36
      %s66 = ssub.s32 %s25, %s32
      %s67 = sor.u32 %s65, %s66
      %p68 = scmp.eq.s32.totalorder %s67, 0
      %s70 = sadd.s32 %s69, 1
      %s71 = scalar_select %p68, %s69, %s70
      %p74 = pneg %p68
      %p75 = scmp.eq.s32.totalorder %s17, 1
      %p76 = por %p74, %p75
      %p77 = scmp.ne.s32.totalorder %s69, %s72
      %p78 = scmp.eq.s32.totalorder %s17, 0
      %p79 = por %p77, %p78
      %p80 = scmp.ne.s32.totalorder %s69, %s72
      %p81 = scmp.eq.s32.totalorder %s22, 1
      %p82 = por %p80, %p81
      %p83 = scmp.ne.s32.totalorder %s72, %s73
      %p84 = scmp.eq.s32.totalorder %s22, 0
      %p85 = por %p83, %p84
      %p86 = scmp.ne.s32.totalorder %s72, %s73
      %p87 = scmp.eq.s32.totalorder %s23, 1
      %p88 = por %p86, %p87
      %p90 = scmp.ne.s32.totalorder %s73, %s89
      %p91 = scmp.eq.s32.totalorder %s23, 0
      %p92 = por %p90, %p91
      %s93 = ssub.s32 %s24, %s36
      %p94 = scmp.eq.s32.totalorder %s93, 0
      %s96 = sadd.s32 %s95, 1
      %s97 = scalar_select %p94, %s95, %s96
      %p100 = pneg %p94
      %p101 = scmp.eq.s32.totalorder %s17, 1
      %p102 = por %p100, %p101
      %p103 = scmp.ne.s32.totalorder %s95, %s98
      %p104 = scmp.eq.s32.totalorder %s17, 0
      %p105 = por %p103, %p104
      %p106 = scmp.ne.s32.totalorder %s95, %s98
      %p107 = scmp.eq.s32.totalorder %s22, 1
      %p108 = por %p106, %p107
      %p109 = scmp.ne.s32.totalorder %s98, %s99
      %p110 = scmp.eq.s32.totalorder %s22, 0
      %p111 = por %p109, %p110
      %p112 = scmp.ne.s32.totalorder %s98, %s99
      %p113 = scmp.eq.s32.totalorder %s23, 1
      %p114 = por %p112, %p113
      %p116 = scmp.ne.s32.totalorder %s99, %s115
      %p117 = scmp.eq.s32.totalorder %s23, 0
      %p118 = por %p116, %p117
      %p119 = scmp.le.s32.totalorder 1, %s17
      %p120 = scmp.lt.s32.totalorder %s17, 3
      %p121 = pnand %p119, %p120
      %p122 = pneg %p121
      // Predicated region
      $region9: #{tpu_custom_call.1} parent=5 // pred_check
        _
      $region10: #{tpu_custom_call.1} parent=5 // pred_check_branch
        %124 = sbr.rel (%p121) target = $region12
      $region11: #{tpu_custom_call.1} parent=5 // pred_region
        %s125 = ssub.s32 %s17, 1
      $region12: #{tpu_custom_call.1} parent=5 // pred_fallthru
        _
      %p126 = scmp.lt.s32.totalorder %s17, 2
      // Predicated region
      $region13: #{tpu_custom_call.1} parent=5 // pred_check
        %p127 = pneg %p126
      $region14: #{tpu_custom_call.1} parent=5 // pred_check_branch
        %129 = sbr.rel (%p127) target = $region16
      $region15: #{tpu_custom_call.1} parent=5 // pred_region
        // Predicated region
        $region17: #{tpu_custom_call.1} parent=15 // pred_check
          %p130 = pneg %p51
        $region18: #{tpu_custom_call.1} parent=15 // pred_check_branch
          %132 = sbr.rel (%p130) target = $region20
        $region19: #{tpu_custom_call.1} parent=15 // pred_region
          %s133 = sand.u32 %s41, 1
          %s134 = scalar_lea.sflag [#allocation3], %s133
          %s135 = sand.u32 %s41, 1
          %s136 = smul.addr %s135, 8
          %s137 = scalar_lea.vmem [#allocation2], %s136
          %s138 = smul.u32 2, %s25
          %s140 = ssub.s32 128, 128
          %141 = vsyncadd %s134, %s140
          %s142 = smul.addr %s24, 2
          %s143 = sadd.s32 %s138, %s142
          %s144 = smul.addr %s143, 64
          %s145 = scalar_lea.hbm %s0, %s144
          %s147 = sshll.u32 %s137, 4
          %s148 = int_to_ptr.vmem [resolvable:$true] %s147
          %150 = dma.hbm_to_vmem [thread:$0]  %s145, 128, %s148, %s134
        $region20: #{tpu_custom_call.1} parent=15 // pred_fallthru
          _
        // Predicated region
        $region21: #{tpu_custom_call.1} parent=15 // pred_check
          %p151 = pneg %p79
        $region22: #{tpu_custom_call.1} parent=15 // pred_check_branch
          %153 = sbr.rel (%p151) target = $region24
        $region23: #{tpu_custom_call.1} parent=15 // pred_region
          %s154 = sand.u32 %s69, 1
          %s155 = scalar_lea.sflag [#allocation6], %s154
          %s156 = sand.u32 %s69, 1
          %s157 = smul.addr %s156, 2
          %s158 = scalar_lea.vmem [#allocation5], %s157
          %s159 = smul.u32 2, %s25
          %s161 = ssub.s32 32, 32
          %162 = vsyncadd %s155, %s161
          %s163 = smul.addr %s24, 2
          %s164 = sadd.s32 %s159, %s163
          %s165 = smul.addr %s164, 16
          %s166 = scalar_lea.hbm %s1, %s165
          %s168 = sshll.u32 %s158, 4
          %s169 = int_to_ptr.vmem [resolvable:$true] %s168
          %171 = dma.hbm_to_vmem [thread:$0]  %s166, 32, %s169, %s155
        $region24: #{tpu_custom_call.1} parent=15 // pred_fallthru
          _
      $region16: #{tpu_custom_call.1} parent=5 // pred_fallthru
        _
      %p172 = scmp.le.s32.totalorder 1, %s17
      %p173 = scmp.lt.s32.totalorder %s17, 3
      %p174 = pnand %p172, %p173
      %p175 = pneg %p174
      // Predicated region
      $region25: #{tpu_custom_call.1} parent=5 // pred_check
        _
      $region26: #{tpu_custom_call.1} parent=5 // pred_check_branch
        %177 = sbr.rel (%p174) target = $region28
      $region27: #{tpu_custom_call.1} parent=5 // pred_region
        %s178 = ssub.s32 %s17, 1
        %s179 = sand.u32 %s44, 1
        %s180 = scalar_lea.sflag [#allocation3], %s179
        %s181 = sand.u32 %s44, 1
        %s182 = smul.addr %s181, 8
        %s183 = scalar_lea.vmem [#allocation2], %s182
        // Predicated region
        $region29: #{tpu_custom_call.1} parent=27 // pred_check
          %p184 = pneg %p57
        $region30: #{tpu_custom_call.1} parent=27 // pred_check_branch
          %186 = sbr.rel (%p184) target = $region32
        $region31: #{tpu_custom_call.1} parent=27 // pred_region
          %187 = dma.done %s180, 128
        $region32: #{tpu_custom_call.1} parent=27 // pred_fallthru
          _
        %s188 = sand.u32 %s72, 1
        %s189 = scalar_lea.sflag [#allocation6], %s188
        %s190 = sand.u32 %s72, 1
        %s191 = smul.addr %s190, 2
        %s192 = scalar_lea.vmem [#allocation5], %s191
        // Predicated region
        $region33: #{tpu_custom_call.1} parent=27 // pred_check
          %p193 = pneg %p85
        $region34: #{tpu_custom_call.1} parent=27 // pred_check_branch
          %195 = sbr.rel (%p193) target = $region36
        $region35: #{tpu_custom_call.1} parent=27 // pred_region
          %196 = dma.done %s189, 32
        $region36: #{tpu_custom_call.1} parent=27 // pred_fallthru
          _
        %s197 = sand.u32 %s44, 1
        %s198 = scalar_lea.sflag [#allocation3], %s197
        %s199 = sand.u32 %s44, 1
        %s200 = smul.addr %s199, 8
        %s201 = scalar_lea.vmem [#allocation2], %s200
        %p202 = pneg %p57
        %p203 = pneg %p54
        %s204 = sand.u32 %s72, 1
        %s205 = scalar_lea.sflag [#allocation6], %s204
        %s206 = sand.u32 %s72, 1
        %s207 = smul.addr %s206, 2
        %s208 = scalar_lea.vmem [#allocation5], %s207
        %p209 = pneg %p85
        %p210 = pneg %p82
        %p211 = pneg %p111
        %p212 = pneg %p108
        %s213 = sand.u32 %s98, 1
        %s214 = scalar_lea.sflag [#allocation4], %s213
        %s215 = sand.u32 %s98, 1
        %s216 = smul.addr %s215, 4
        %s217 = scalar_lea.vmem [#allocation7], %s216
        %s218 = smul.u32 2, %s27
        %s219 = smul.u32 2, %s27
        %p220 = scmp.eq.s32.totalorder %s27, 0
        // Predicated region
        $region37: #{tpu_custom_call.1} parent=27 // pred_check
          %p221 = pneg %p220
        $region38: #{tpu_custom_call.1} parent=27 // pred_check_branch
          %223 = sbr.rel (%p221) target = $region40
        $region39: #{tpu_custom_call.1} parent=27 // pred_region
          %224 = vst [vmem:[%s217] sm:$0xf] 0.0
        $region40: #{tpu_custom_call.1} parent=27 // pred_fallthru
          _
        %v225 = vld [vmem:[%s183] sm:$0xff]
        %v227 = vcombine.high %v225, %v225
        %vm229 = vcmask 1043456
        %v230 = vsel %vm229, %v225, -inf
        %v231 = vrot.slane %v230, 4
        %v232 = vmax.f32 %v230, %v231
        %v233 = vrot.slane %v232, 2
        %v234 = vmax.f32 %v232, %v233
        %v235 = vrot.slane %v234, 1
        %v236 = vmax.f32 %v234, %v235
        %v237 = vsel %vm229, %v227, -inf
        %v238 = vrot.slane %v237, 4
        %v239 = vmax.f32 %v237, %v238
        %v240 = vrot.slane %v239, 2
        %v241 = vmax.f32 %v239, %v240
        %v242 = vrot.slane %v241, 1
        %v243 = vmax.f32 %v241, %v242
        %v246 = vcombine.low %v236, %v243
        %v248 = vsub.f32 %v225, %v246
        %v249 = vmul.f32 %v248, 1.442695
        %v250 = vpow.pop %v249
        %v252 = vcombine.high %v250, %v250
        %v254 = vsel %vm229, %v250, 0.0
        %v255 = vrot.slane %v254, 4
        %v256 = vadd.f32 %v254, %v255
        %v257 = vrot.slane %v256, 2
        %v258 = vadd.f32 %v256, %v257
        %v259 = vrot.slane %v258, 1
        %v260 = vadd.f32 %v258, %v259
        %v261 = vsel %vm229, %v252, 0.0
        %v262 = vrot.slane %v261, 4
        %v263 = vadd.f32 %v261, %v262
        %v264 = vrot.slane %v263, 2
        %v265 = vadd.f32 %v263, %v264
        %v266 = vrot.slane %v265, 1
        %v267 = vadd.f32 %v265, %v266
        %v268 = vrcp.pop %v260
        %v269 = vrcp.pop %v267
        %v272 = vcombine.low %v268, %v269
        %v274 = vmul.f32 %v250, %v272
        %v275 = vld [vmem:[%s192] sm:$0x3]
        %v276 = vlaneseq
        %v277 = vshrl.u32 %v276, 7
        %v278 = vlaneseq
        %v279 = vshrl.u32 %v278, 7
        %v280 = vsub.s32 0, %v279
        %v281 = vrot.slane %v275, %v280
        %v282 = vlaneseq
        %v283 = vshrl.u32 %v282, 7
        %v284 = vsub.s32 1, %v283
        %v285 = vrot.slane %v275, %v284
        %vm286 = vcmp.eq.s32.totalorder %v277, %v281
        %vm287 = vcmp.eq.s32.totalorder %v277, %v285
        %v289 = vcombine.high %v274, %v274
        %v291 = vsel %vm286, %v274, 0.0
        %v292 = vsel %vm287, %v289, 0.0
        %v293 = vsel %vm229, %v291, 0.0
        %v294 = vsel %vm229, %v292, 0.0
        %v295 = vadd.f32 %v293, %v294
        %296 = vadd.xlane.f32.xlu0 %v295
        %v297 = vpop.xlane.xlu0 %296
        %v298 = vsel %vm286, 1.0, 0.0
        %v299 = vsel %vm287, 1.0, 0.0
        %v300 = vsel %vm229, %v298, 0.0
        %v301 = vsel %vm229, %v299, 0.0
        %v302 = vadd.f32 %v300, %v301
        %303 = vadd.xlane.f32.xlu0 %v302
        %v304 = vpop.xlane.xlu0 %303
        %v305 = vmul.f32 %v274, %v274
        %v307 = vcombine.high %v305, %v305
        %v309 = vsel %vm229, %v305, 0.0
        %v310 = vsel %vm229, %v307, 0.0
        %v311 = vadd.f32 %v309, %v310
        %312 = vadd.xlane.f32.xlu0 %v311
        %v313 = vpop.xlane.xlu0 %312
        %v314 = vlaneseq
        %v315 = vand.u32 %v314, 127
        %vm316 = vcmp.eq.s32.totalorder %v315, 0
        %v317 = vsel %vm316, %v297, 0.0
        %vm318 = vcmp.eq.s32.totalorder %v315, 1
        %v319 = vsel %vm318, %v304, 0.0
        %v320 = vadd.f32 %v317, %v319
        %vm321 = vcmp.eq.s32.totalorder %v315, 2
        %v322 = vsel %vm321, %v313, 0.0
        %v323 = vadd.f32 %v320, %v322
        %v324 = vld [vmem:[%s217] sm:$0xf]
        %v325 = vadd.f32 %v324, %v323
        %326 = vst [vmem:[%s217] sm:$0xf] %v325
        %s327 = sand.u32 %s98, 1
        %s328 = scalar_lea.sflag [#allocation4], %s327
        %s329 = sand.u32 %s98, 1
        %s330 = smul.addr %s329, 4
        %s331 = scalar_lea.vmem [#allocation7], %s330
        // Predicated region
        $region41: #{tpu_custom_call.1} parent=27 // pred_check
          %p332 = pneg %p108
        $region42: #{tpu_custom_call.1} parent=27 // pred_check_branch
          %334 = sbr.rel (%p332) target = $region44
        $region43: #{tpu_custom_call.1} parent=27 // pred_region
          %s336 = ssub.s32 64, 64
          %337 = vsyncadd %s328, %s336
          %s338 = smul.addr %s26, 64
          %s339 = scalar_lea.hbm %s2, %s338
          %s341 = sshll.u32 %s331, 4
          %s342 = int_to_ptr.vmem [resolvable:$true] %s341
          %344 = dma.vmem_to_hbm [thread:$0]  %s342, 64, %s339, %s328
        $region44: #{tpu_custom_call.1} parent=27 // pred_fallthru
          _
      $region28: #{tpu_custom_call.1} parent=5 // pred_fallthru
        _
      %p345 = scmp.le.s32.totalorder 2, %s17
      // Predicated region
      $region45: #{tpu_custom_call.1} parent=5 // pred_check
        %p346 = pneg %p345
      $region46: #{tpu_custom_call.1} parent=5 // pred_check_branch
        %348 = sbr.rel (%p346) target = $region48
      $region47: #{tpu_custom_call.1} parent=5 // pred_region
        %s349 = ssub.s32 %s17, 2
        // Predicated region
        $region49: #{tpu_custom_call.1} parent=47 // pred_check
          %p350 = pneg %p114
        $region50: #{tpu_custom_call.1} parent=47 // pred_check_branch
          %352 = sbr.rel (%p350) target = $region52
        $region51: #{tpu_custom_call.1} parent=47 // pred_region
          %s353 = sand.u32 %s99, 1
          %s354 = scalar_lea.sflag [#allocation4], %s353
          %s355 = sand.u32 %s99, 1
          %s356 = smul.addr %s355, 4
          %s357 = scalar_lea.vmem [#allocation7], %s356
          %358 = dma.done %s354, 64
        $region52: #{tpu_custom_call.1} parent=47 // pred_fallthru
          _
      $region48: #{tpu_custom_call.1} parent=5 // pred_fallthru
        _
    $region6: #{tpu_custom_call.1} parent=1 // loop_footer
      %s21 = sadd.s32 1, %s17
    $region7: #{tpu_custom_call.1} parent=1 // loop_footer_branch
      %16 = sbr.rel target = $region3
    $region8: #{tpu_custom_call.1} parent=1 // loop_exit
      _
    %359 = vsyncpa [#allocation3], 1
    %s360 = scalar_lea.sflag [#allocation3], 1
    %361 = vsyncpa %s360, 1
    %362 = vsyncpa [#allocation6], 1
    %s363 = scalar_lea.sflag [#allocation6], 1
    %364 = vsyncpa %s363, 1
    %365 = vsyncpa [#allocation4], 1
    %s366 = scalar_lea.sflag [#allocation4], 1
    %367 = vsyncpa %s366, 1

</llo_original>
